<compile_context>
chip_gen: v7x
topology: tpu7x:2x2x1
jax: 0.10.0
libtpu: 0.0.40
codegen_flags: <defaults>
</compile_context>

<pallas_src>
import functools

import jax
import jax.numpy as jnp
from jax.experimental import pallas as pl
from jax.experimental.pallas import tpu as pltpu


def _round_up(x, m):
    return ((x + m - 1) // m) * m


def _pad2(x, rows, cols):
    return jnp.pad(x, ((0, rows - x.shape[0]), (0, cols - x.shape[1])))


def _gsm_encoder_kernel(
    bow_ref, eps_ref,
    w1_ref, b1_ref,
    w2_ref, b2_ref,
    wh_ref, bh_ref,      # fused heads: [W_mu | W_log_sigma], each a 128-lane slab
    wt_ref, bt_ref,      # theta linear (padded lanes of bt carry -1e30 mask)
    out_ref,             # fused output slab: [mu | std | theta], each TP lanes
    acc_ref,             # (TB, HP) f32 scratch: layer-1 accumulator over K tiles
    *, tp, activation,
):
    k = pl.program_id(1)
    nk = pl.num_programs(1)

    @pl.when(k == 0)
    def _init():
        acc_ref[...] = jnp.zeros_like(acc_ref)

    # Layer-1 partial product for this vocab tile (bf16 operands, f32 accumulate).
    acc_ref[...] += jnp.dot(bow_ref[...], w1_ref[...],
                            preferred_element_type=jnp.float32)

    @pl.when(k == nk - 1)
    def _finalize():
        def act(v):
            if activation == "softplus":
                # numerically safe softplus (extra EUP ops; see cost estimate)
                return jnp.maximum(v, 0.0) + jnp.log1p(jnp.exp(-jnp.abs(v)))
            return jnp.maximum(v, 0.0)

        # hidden layer 1 + 2
        h = act(acc_ref[...] + b1_ref[...])
        h = jnp.dot(h.astype(w2_ref.dtype), w2_ref[...],
                    preferred_element_type=jnp.float32)
        h = act(h + b2_ref[...])
        # TODO(synk): Dropout is eval-mode identity here; training-mode random
        # mask (keep_prob scaling) is not implemented.

        # fused heads: one matmul producing [mu | log_sigma] as two 128-lane slabs
        heads = jnp.dot(h.astype(wh_ref.dtype), wh_ref[...],
                        preferred_element_type=jnp.float32) + bh_ref[...]
        mu = heads[:, :tp]                       # padded lanes are exactly 0
        std = jnp.exp(heads[:, tp:2 * tp])       # padded lanes exp(0)=1 (sliced off in wrapper)

        # reparameterize: padded eps lanes are 0, padded mu lanes are 0
        z = mu + eps_ref[...].astype(jnp.float32) * std

        # theta = softmax(z @ Wt + bt); padded lanes are killed by the -1e30
        # baked into bt, so no in-kernel iota/mask is needed.
        logits = jnp.dot(z.astype(wt_ref.dtype), wt_ref[...],
                         preferred_element_type=jnp.float32) + bt_ref[...]
        m = jnp.max(logits, axis=-1, keepdims=True)
        e = jnp.exp(logits - m)                  # padded lanes underflow to 0
        theta = e / jnp.sum(e, axis=-1, keepdims=True)

        # single fused, lane-dense output store: [mu | std | theta]
        out_ref[:, :tp] = mu.astype(out_ref.dtype)
        out_ref[:, tp:2 * tp] = std.astype(out_ref.dtype)
        out_ref[:, 2 * tp:3 * tp] = theta.astype(out_ref.dtype)


@functools.partial(jax.jit,
                   static_argnames=("block_batch", "block_k", "activation"))
def gsm_encoder_forward(bow, eps, params, *, block_batch=256, block_k=512,
                        activation="relu"):
    B, Din = bow.shape
    H = params["w1"].shape[1]
    T = params["w_theta"].shape[1]

    HP = _round_up(H, 128)                 # lane-dense hidden width
    TP = _round_up(T, 128)                 # lane-dense topic width (one 128-lane slab)

    # Vocab (reduction) tiling: MXU-cadence-aligned, bounds VMEM independent of Din.
    DK = min(block_k, _round_up(Din, 256))
    Din_pad = _round_up(Din, DK)
    nk = Din_pad // DK

    # Batch tiling: >= 2 tiles when B >= 16 so the "parallel" axis can shard
    # across v7x's two TensorCores (costs nothing on single-TC v5e/v6e).
    if B >= 16:
        tb_cap = _round_up(pl.cdiv(B, 2), 8)
    else:
        tb_cap = _round_up(B, 8)
    TB = min(block_batch, tb_cap)
    nb = pl.cdiv(B, TB)
    B_pad = nb * TB

    f32, bf16 = jnp.float32, jnp.bfloat16

    # Zero-pad so every block is lane-dense; padded rows/cols are zero so no
    # garbage leaks into real lanes.  Streamed operands go to bf16.
    bow_p = _pad2(bow, B_pad, Din_pad).astype(bf16)
    eps_p = _pad2(eps, B_pad, TP).astype(bf16)

    w1_p = _pad2(params["w1"], Din_pad, HP).astype(bf16)
    b1_p = _pad2(params["b1"].reshape(1, -1), 1, HP).astype(f32)
    w2_p = _pad2(params["w2"], HP, HP).astype(bf16)
    b2_p = _pad2(params["b2"].reshape(1, -1), 1, HP).astype(f32)
    wh_p = jnp.concatenate(
        [_pad2(params["w_mu"], HP, TP), _pad2(params["w_log_sigma"], HP, TP)],
        axis=1).astype(bf16)
    bh_p = jnp.concatenate(
        [_pad2(params["b_mu"].reshape(1, -1), 1, TP),
         _pad2(params["b_log_sigma"].reshape(1, -1), 1, TP)], axis=1).astype(f32)
    wt_p = _pad2(params["w_theta"], TP, TP).astype(bf16)
    # Bake the softmax padding mask into b_theta: padded lanes become -1e30.
    lane_is_real = (jnp.arange(TP) < T)[None, :]
    bt_p = jnp.where(lane_is_real,
                     _pad2(params["b_theta"].reshape(1, -1).astype(f32), 1, TP),
                     jnp.float32(-1e30))

    kernel = functools.partial(
        _gsm_encoder_kernel, tp=TP, activation=activation)

    # Cost estimate (bf16 streamed bytes, f32 biases/outputs).
    flops = 2 * B_pad * (Din_pad * HP + HP * HP + HP * 2 * TP + TP * TP)
    trans_per_row = 2 * TP + (4 * HP if activation == "softplus" else 0)
    transcendentals = B_pad * trans_per_row
    bytes_accessed = (
        2 * (B_pad * Din_pad + B_pad * TP)                      # bow + eps (bf16)
        + 2 * (Din_pad * HP + HP * HP + HP * 2 * TP + TP * TP)  # weights (bf16)
        + 4 * (2 * HP + 3 * TP)                                 # biases (f32)
        + 4 * (B_pad * 3 * TP))                                 # fused output (f32)

    # Explicit VMEM budget from the actual buffer sum (bf16 streams double
    # buffered, constants single buffered, f32 output double buffered, scratch).
    buf_bytes = (
        2 * TB * DK * 2                                   # bow tiles
        + 2 * DK * HP * 2                                 # W1 K-tiles
        + 2 * TB * TP * 2                                 # eps tiles
        + (HP * HP + HP * 2 * TP + TP * TP) * 2           # resident weights (x1)
        + (HP + HP + 2 * TP + TP) * 4                     # resident biases (x1)
        + 2 * TB * 3 * TP * 4                             # fused output tiles
        + TB * HP * 4)                                    # layer-1 accumulator
    vmem_limit = int(min(max(2 * buf_bytes + (4 << 20), 32 << 20), 64 << 20))

    def const_spec(shape):
        # constant index_map -> never re-fetched; single-buffer to save VMEM
        return pl.BlockSpec(shape, lambda i, k: (0, 0),
                            pipeline_mode=pl.Buffered(1))

    grid_spec = pltpu.PrefetchScalarGridSpec(
        num_scalar_prefetch=0,
        grid=(nb, nk),                                     # reduction axis last
        in_specs=[
            pl.BlockSpec((TB, DK), lambda i, k: (i, k)),   # bow (streamed over K)
            pl.BlockSpec((TB, TP), lambda i, k: (i, 0)),   # eps
            pl.BlockSpec((DK, HP), lambda i, k: (k, 0)),   # W1 K-tile (streamed)
            const_spec((1, HP)),                           # b1
            const_spec((HP, HP)),                          # W2
            const_spec((1, HP)),                           # b2
            const_spec((HP, 2 * TP)),                      # fused head W
            const_spec((1, 2 * TP)),                       # fused head b
            const_spec((TP, TP)),                          # W_theta
            const_spec((1, TP)),                           # b_theta (mask baked in)
        ],
        out_specs=pl.BlockSpec((TB, 3 * TP), lambda i, k: (i, 0)),
        scratch_shapes=[pltpu.VMEM((TB, HP), jnp.float32)],
    )

    out_p = pl.pallas_call(
        kernel,
        out_shape=jax.ShapeDtypeStruct((B_pad, 3 * TP), jnp.float32),
        grid_spec=grid_spec,
        compiler_params=pltpu.CompilerParams(
            dimension_semantics=("parallel", "arbitrary"),
            vmem_limit_bytes=vmem_limit),
        cost_estimate=pl.CostEstimate(
            flops=int(flops),
            transcendentals=int(transcendentals),
            bytes_accessed=int(bytes_accessed)),
    )(bow_p, eps_p, w1_p, b1_p, w2_p, b2_p, wh_p, bh_p, wt_p, bt_p)

    # slice the fused padded slab back to the real (B, topic_dim) outputs
    mu = out_p[:B, :T]
    std = out_p[:B, TP:TP + T]
    theta = out_p[:B, 2 * TP:2 * TP + T]
    return mu, std, theta


def init_params(key, input_size, hidden_size, topic_dim=25):
    ks = jax.random.split(key, 10)

    def linear(kw, kb, fan_in, fan_out):
        bound_w = float(jnp.sqrt(6.0 / fan_in))
        w = jax.random.uniform(kw, (fan_in, fan_out), jnp.float32, -bound_w, bound_w)
        bound_b = float(1.0 / jnp.sqrt(fan_in))
        b = jax.random.uniform(kb, (fan_out,), jnp.float32, -bound_b, bound_b)
        return w, b

    w1, b1 = linear(ks[0], ks[1], input_size, hidden_size)
    w2, b2 = linear(ks[2], ks[3], hidden_size, hidden_size)
    wmu, bmu = linear(ks[4], ks[5], hidden_size, topic_dim)
    wls, bls = linear(ks[6], ks[7], hidden_size, topic_dim)
    wt, bt = linear(ks[8], ks[9], topic_dim, topic_dim)
    return {
        "w1": w1, "b1": b1, "w2": w2, "b2": b2,
        "w_mu": wmu, "b_mu": bmu,
        "w_log_sigma": wls, "b_log_sigma": bls,
        "w_theta": wt, "b_theta": bt,
    }


def _reference_forward(bow, eps, p):
    x = jnp.maximum(bow @ p["w1"] + p["b1"], 0.0)
    x = jnp.maximum(x @ p["w2"] + p["b2"], 0.0)
    mu = x @ p["w_mu"] + p["b_mu"]
    std = jnp.exp(x @ p["w_log_sigma"] + p["b_log_sigma"])
    z = mu + eps * std
    theta = jax.nn.softmax(z @ p["w_theta"] + p["b_theta"], axis=1)
    return mu, std, theta


if __name__ == "__main__":
    key = jax.random.PRNGKey(0)
    k_params, k_bow, k_eps = jax.random.split(key, 3)

    batch = 8
    input_size = 64     # bag-of-words vocabulary size (small demo)
    hidden_size = 32
    topic_dim = 25

    params = init_params(k_params, input_size, hidden_size, topic_dim)
    bow = jax.random.uniform(k_bow, (batch, input_size), dtype=jnp.float32)
    eps = jax.random.normal(k_eps, (batch, topic_dim), dtype=jnp.float32)

    mu, std, theta = gsm_encoder_forward(bow, eps, params)
    mu, std, theta = jax.block_until_ready((mu, std, theta))

    # Reference is pure f32; the kernel streams bf16 with f32 accumulation, so
    # compare with bf16-appropriate tolerances.
    mu_r, std_r, theta_r = _reference_forward(bow, eps, params)
    assert mu.shape == mu_r.shape and std.shape == std_r.shape and theta.shape == theta_r.shape
    assert jnp.allclose(mu, mu_r, atol=5e-2, rtol=5e-2), "mu mismatch"
    assert jnp.allclose(std, std_r, atol=5e-2, rtol=5e-2), "std mismatch"
    assert jnp.allclose(theta, theta_r, atol=5e-2, rtol=5e-2), "theta mismatch"
    # theta rows sum to 1 (normalization is done exactly in f32)
    assert jnp.allclose(jnp.sum(theta, axis=1), 1.0, atol=1e-4)

    print("KERNEL_OK")
</pallas_src>

<mosaic_0001>
module attributes {stable_mosaic.version = 11 : i64} {
  func.func @_gsm_encoder_kernel(%arg0: i32, %arg1: i32, %arg2: memref<8x256xbf16, #tpu.memory_space<vmem>>, %arg3: memref<8x128xbf16, #tpu.memory_space<vmem>>, %arg4: memref<256x128xbf16, #tpu.memory_space<vmem>>, %arg5: memref<1x128xf32, #tpu.memory_space<vmem>>, %arg6: memref<128x128xbf16, #tpu.memory_space<vmem>>, %arg7: memref<1x128xf32, #tpu.memory_space<vmem>>, %arg8: memref<128x256xbf16, #tpu.memory_space<vmem>>, %arg9: memref<1x256xf32, #tpu.memory_space<vmem>>, %arg10: memref<128x128xbf16, #tpu.memory_space<vmem>>, %arg11: memref<1x128xf32, #tpu.memory_space<vmem>>, %arg12: memref<8x384xf32, #tpu.memory_space<vmem>>, %arg13: memref<8x128xf32, #tpu.memory_space<vmem>>) attributes {dimension_semantics = [#tpu.dimension_semantics<parallel>, #tpu.dimension_semantics<arbitrary>], iteration_bounds = array<i64: 1, 1>, scalar_prefetch = 0 : i64, scratch_operands = 1 : i64, tpu.core_type = #tpu.core_type<tc>, window_params = [{transform_indices = @transform_0, window_bounds = array<i64: 8, 256>}, {transform_indices = @transform_1, window_bounds = array<i64: 8, 128>}, {transform_indices = @transform_2, window_bounds = array<i64: 256, 128>}, {pipeline_mode = #tpu.pipeline_mode<synchronous>, transform_indices = @transform_3, window_bounds = array<i64: 1, 128>}, {pipeline_mode = #tpu.pipeline_mode<synchronous>, transform_indices = @transform_4, window_bounds = array<i64: 128, 128>}, {pipeline_mode = #tpu.pipeline_mode<synchronous>, transform_indices = @transform_5, window_bounds = array<i64: 1, 128>}, {pipeline_mode = #tpu.pipeline_mode<synchronous>, transform_indices = @transform_6, window_bounds = array<i64: 128, 256>}, {pipeline_mode = #tpu.pipeline_mode<synchronous>, transform_indices = @transform_7, window_bounds = array<i64: 1, 256>}, {pipeline_mode = #tpu.pipeline_mode<synchronous>, transform_indices = @transform_8, window_bounds = array<i64: 128, 128>}, {pipeline_mode = #tpu.pipeline_mode<synchronous>, transform_indices = @transform_9, window_bounds = array<i64: 1, 128>}, {transform_indices = @transform_10, window_bounds = array<i64: 8, 384>}]} {
    %c0_i32 = arith.constant 0 : i32
    %0 = arith.cmpi eq, %arg1, %c0_i32 : i32
    %1 = arith.extui %0 : i1 to i32
    %c0_i32_0 = arith.constant 0 : i32
    %2 = arith.cmpi ne, %1, %c0_i32_0 : i32
    scf.if %2 {
      %cst_10 = arith.constant 0.000000e+00 : f32
      %12 = vector.broadcast %cst_10 : f32 to vector<8x128xf32>
      %c0_11 = arith.constant 0 : index
      %c0_12 = arith.constant 0 : index
      %13 = vector.load %arg13[%c0_11, %c0_12] : memref<8x128xf32, #tpu.memory_space<vmem>>, vector<8x128xf32>
      tpu.vector_store %arg13[%c0_11, %c0_12], %12 {strides = array<i32>} : memref<8x128xf32, #tpu.memory_space<vmem>>, vector<8x128xf32>,
    } else {
    }
    %c0 = arith.constant 0 : index
    %c0_1 = arith.constant 0 : index
    %3 = vector.load %arg13[%c0, %c0_1] : memref<8x128xf32, #tpu.memory_space<vmem>>, vector<8x128xf32>
    %c0_2 = arith.constant 0 : index
    %c0_3 = arith.constant 0 : index
    %4 = vector.load %arg2[%c0_2, %c0_3] : memref<8x256xbf16, #tpu.memory_space<vmem>>, vector<8x256xbf16>
    %c0_4 = arith.constant 0 : index
    %c0_5 = arith.constant 0 : index
    %5 = vector.load %arg4[%c0_4, %c0_5] : memref<256x128xbf16, #tpu.memory_space<vmem>>, vector<256x128xbf16>
    %cst = arith.constant dense<0.000000e+00> : vector<8x128xf32>
    %6 = tpu.matmul %4, %5, %cst {dimension_numbers = #tpu.dot_dimension_numbers<[1], [0], [0], [1], [0, 0, 1, 1], [], []>} : vector<8x256xbf16>, vector<256x128xbf16>, vector<8x128xf32> -> vector<8x128xf32>
    %7 = arith.addf %3, %6 : vector<8x128xf32>
    %c0_6 = arith.constant 0 : index
    %c0_7 = arith.constant 0 : index
    %8 = vector.load %arg13[%c0_6, %c0_7] : memref<8x128xf32, #tpu.memory_space<vmem>>, vector<8x128xf32>
    tpu.vector_store %arg13[%c0_6, %c0_7], %7 {strides = array<i32>} : memref<8x128xf32, #tpu.memory_space<vmem>>, vector<8x128xf32>,
    %c0_i32_8 = arith.constant 0 : i32
    %9 = arith.cmpi eq, %arg1, %c0_i32_8 : i32
    %10 = arith.extui %9 : i1 to i32
    %c0_i32_9 = arith.constant 0 : i32
    %11 = arith.cmpi ne, %10, %c0_i32_9 : i32
    scf.if %11 {
      %c0_10 = arith.constant 0 : index
      %c0_11 = arith.constant 0 : index
      %12 = vector.load %arg13[%c0_10, %c0_11] : memref<8x128xf32, #tpu.memory_space<vmem>>, vector<8x128xf32>
      %c0_12 = arith.constant 0 : index
      %c0_13 = arith.constant 0 : index
      %13 = vector.load %arg5[%c0_12, %c0_13] : memref<1x128xf32, #tpu.memory_space<vmem>>, vector<1x128xf32>
      %14 = vector.broadcast %13 : vector<1x128xf32> to vector<8x128xf32>
      %15 = arith.addf %12, %14 : vector<8x128xf32>
      %cst_14 = arith.constant 0.000000e+00 : f32
      %16 = vector.broadcast %cst_14 : f32 to vector<8x128xf32>
      %17 = arith.maximumf %15, %16 : vector<8x128xf32>
      %18 = arith.truncf %17 : vector<8x128xf32> to vector<8x128xbf16>
      %c0_15 = arith.constant 0 : index
      %c0_16 = arith.constant 0 : index
      %19 = vector.load %arg6[%c0_15, %c0_16] : memref<128x128xbf16, #tpu.memory_space<vmem>>, vector<128x128xbf16>
      %cst_17 = arith.constant dense<0.000000e+00> : vector<8x128xf32>
      %20 = tpu.matmul %18, %19, %cst_17 {dimension_numbers = #tpu.dot_dimension_numbers<[1], [0], [0], [1], [0, 0, 1, 1], [], []>} : vector<8x128xbf16>, vector<128x128xbf16>, vector<8x128xf32> -> vector<8x128xf32>
      %c0_18 = arith.constant 0 : index
      %c0_19 = arith.constant 0 : index
      %21 = vector.load %arg7[%c0_18, %c0_19] : memref<1x128xf32, #tpu.memory_space<vmem>>, vector<1x128xf32>
      %22 = vector.broadcast %21 : vector<1x128xf32> to vector<8x128xf32>
      %23 = arith.addf %20, %22 : vector<8x128xf32>
      %cst_20 = arith.constant 0.000000e+00 : f32
      %24 = vector.broadcast %cst_20 : f32 to vector<8x128xf32>
      %25 = arith.maximumf %23, %24 : vector<8x128xf32>
      %26 = arith.truncf %25 : vector<8x128xf32> to vector<8x128xbf16>
      %c0_21 = arith.constant 0 : index
      %c0_22 = arith.constant 0 : index
      %27 = vector.load %arg8[%c0_21, %c0_22] : memref<128x256xbf16, #tpu.memory_space<vmem>>, vector<128x256xbf16>
      %cst_23 = arith.constant dense<0.000000e+00> : vector<8x256xf32>
      %28 = tpu.matmul %26, %27, %cst_23 {dimension_numbers = #tpu.dot_dimension_numbers<[1], [0], [0], [1], [0, 0, 1, 1], [], []>} : vector<8x128xbf16>, vector<128x256xbf16>, vector<8x256xf32> -> vector<8x256xf32>
      %c0_24 = arith.constant 0 : index
      %c0_25 = arith.constant 0 : index
      %29 = vector.load %arg9[%c0_24, %c0_25] : memref<1x256xf32, #tpu.memory_space<vmem>>, vector<1x256xf32>
      %30 = vector.broadcast %29 : vector<1x256xf32> to vector<8x256xf32>
      %31 = arith.addf %28, %30 : vector<8x256xf32>
      %32 = vector.extract_strided_slice %31 {offsets = [0, 0], sizes = [8, 128], strides = [1, 1]} : vector<8x256xf32> to vector<8x128xf32>
      %33 = vector.extract_strided_slice %31 {offsets = [0, 128], sizes = [8, 128], strides = [1, 1]} : vector<8x256xf32> to vector<8x128xf32>
      %34 = math.exp %33 : vector<8x128xf32>
      %c0_26 = arith.constant 0 : index
      %c0_27 = arith.constant 0 : index
      %35 = vector.load %arg3[%c0_26, %c0_27] : memref<8x128xbf16, #tpu.memory_space<vmem>>, vector<8x128xbf16>
      %36 = arith.extf %35 : vector<8x128xbf16> to vector<8x128xf32>
      %37 = arith.mulf %36, %34 : vector<8x128xf32>
      %38 = arith.addf %32, %37 : vector<8x128xf32>
      %39 = arith.truncf %38 : vector<8x128xf32> to vector<8x128xbf16>
      %c0_28 = arith.constant 0 : index
      %c0_29 = arith.constant 0 : index
      %40 = vector.load %arg10[%c0_28, %c0_29] : memref<128x128xbf16, #tpu.memory_space<vmem>>, vector<128x128xbf16>
      %cst_30 = arith.constant dense<0.000000e+00> : vector<8x128xf32>
      %41 = tpu.matmul %39, %40, %cst_30 {dimension_numbers = #tpu.dot_dimension_numbers<[1], [0], [0], [1], [0, 0, 1, 1], [], []>} : vector<8x128xbf16>, vector<128x128xbf16>, vector<8x128xf32> -> vector<8x128xf32>
      %c0_31 = arith.constant 0 : index
      %c0_32 = arith.constant 0 : index
      %42 = vector.load %arg11[%c0_31, %c0_32] : memref<1x128xf32, #tpu.memory_space<vmem>>, vector<1x128xf32>
      %43 = vector.broadcast %42 : vector<1x128xf32> to vector<8x128xf32>
      %44 = arith.addf %41, %43 : vector<8x128xf32>
      %cst_33 = arith.constant dense<0xFF800000> : vector<8xf32>
      %45 = vector.multi_reduction <maximumf>, %44, %cst_33 [1] : vector<8x128xf32> to vector<8xf32>
      %46 = vector.shape_cast %45 : vector<8xf32> to vector<8x1xf32>
      %47 = vector.broadcast %46 : vector<8x1xf32> to vector<8x128xf32>
      %48 = arith.subf %44, %47 : vector<8x128xf32>
      %49 = math.exp %48 : vector<8x128xf32>
      %cst_34 = arith.constant dense<0.000000e+00> : vector<8xf32>
      %50 = vector.multi_reduction <add>, %49, %cst_34 [1] : vector<8x128xf32> to vector<8xf32>
      %51 = vector.shape_cast %50 : vector<8xf32> to vector<8x1xf32>
      %52 = vector.broadcast %51 : vector<8x1xf32> to vector<8x128xf32>
      %53 = arith.divf %49, %52 : vector<8x128xf32>
      %c0_35 = arith.constant 0 : index
      %c0_36 = arith.constant 0 : index
      %54 = vector.load %arg12[%c0_35, %c0_36] : memref<8x384xf32, #tpu.memory_space<vmem>>, vector<8x128xf32>
      tpu.vector_store %arg12[%c0_35, %c0_36], %32 {strides = array<i32>} : memref<8x384xf32, #tpu.memory_space<vmem>>, vector<8x128xf32>,
      %c0_37 = arith.constant 0 : index
      %c128 = arith.constant 128 : index
      %55 = vector.load %arg12[%c0_37, %c128] : memref<8x384xf32, #tpu.memory_space<vmem>>, vector<8x128xf32>
      tpu.vector_store %arg12[%c0_37, %c128], %34 {strides = array<i32>} : memref<8x384xf32, #tpu.memory_space<vmem>>, vector<8x128xf32>,
      %c0_38 = arith.constant 0 : index
      %c256 = arith.constant 256 : index
      %56 = vector.load %arg12[%c0_38, %c256] : memref<8x384xf32, #tpu.memory_space<vmem>>, vector<8x128xf32>
      tpu.vector_store %arg12[%c0_38, %c256], %53 {strides = array<i32>} : memref<8x384xf32, #tpu.memory_space<vmem>>, vector<8x128xf32>,
    } else {
    }
    return
  }
  func.func @transform_0(%arg0: i32, %arg1: i32) -> (i32, i32) {
    %c0_i32 = arith.constant 0 : i32
    return %arg0, %arg1 : i32, i32
  }
  func.func @transform_1(%arg0: i32, %arg1: i32) -> (i32, i32) {
    %c0_i32 = arith.constant 0 : i32
    %c0_i32_0 = arith.constant 0 : i32
    return %arg0, %c0_i32 : i32, i32
  }
  func.func @transform_2(%arg0: i32, %arg1: i32) -> (i32, i32) {
    %c0_i32 = arith.constant 0 : i32
    %c0_i32_0 = arith.constant 0 : i32
    return %arg1, %c0_i32 : i32, i32
  }
  func.func @transform_3(%arg0: i32, %arg1: i32) -> (i32, i32) {
    %c0_i32 = arith.constant 0 : i32
    %c0_i32_0 = arith.constant 0 : i32
    %c0_i32_1 = arith.constant 0 : i32
    return %c0_i32, %c0_i32_0 : i32, i32
  }
  func.func @transform_4(%arg0: i32, %arg1: i32) -> (i32, i32) {
    %c0_i32 = arith.constant 0 : i32
    %c0_i32_0 = arith.constant 0 : i32
    %c0_i32_1 = arith.constant 0 : i32
    return %c0_i32, %c0_i32_0 : i32, i32
  }
  func.func @transform_5(%arg0: i32, %arg1: i32) -> (i32, i32) {
    %c0_i32 = arith.constant 0 : i32
    %c0_i32_0 = arith.constant 0 : i32
    %c0_i32_1 = arith.constant 0 : i32
    return %c0_i32, %c0_i32_0 : i32, i32
  }
  func.func @transform_6(%arg0: i32, %arg1: i32) -> (i32, i32) {
    %c0_i32 = arith.constant 0 : i32
    %c0_i32_0 = arith.constant 0 : i32
    %c0_i32_1 = arith.constant 0 : i32
    return %c0_i32, %c0_i32_0 : i32, i32
  }
  func.func @transform_7(%arg0: i32, %arg1: i32) -> (i32, i32) {
    %c0_i32 = arith.constant 0 : i32
    %c0_i32_0 = arith.constant 0 : i32
    %c0_i32_1 = arith.constant 0 : i32
    return %c0_i32, %c0_i32_0 : i32, i32
  }
  func.func @transform_8(%arg0: i32, %arg1: i32) -> (i32, i32) {
    %c0_i32 = arith.constant 0 : i32
    %c0_i32_0 = arith.constant 0 : i32
    %c0_i32_1 = arith.constant 0 : i32
    return %c0_i32, %c0_i32_0 : i32, i32
  }
  func.func @transform_9(%arg0: i32, %arg1: i32) -> (i32, i32) {
    %c0_i32 = arith.constant 0 : i32
    %c0_i32_0 = arith.constant 0 : i32
    %c0_i32_1 = arith.constant 0 : i32
    return %c0_i32, %c0_i32_0 : i32, i32
  }
  func.func @transform_10(%arg0: i32, %arg1: i32) -> (i32, i32) {
    %c0_i32 = arith.constant 0 : i32
    %c0_i32_0 = arith.constant 0 : i32
    return %arg0, %c0_i32 : i32, i32
  }
}

</mosaic_0001>

<llo_original>
// kernel: gsm_encoder_forward.1
$region0: #{gsm_encoder_forward.1}
  #allocation0 [shape = 'u32[]', space=smem, size = 0x4, offset = 0x4, fixed_abs, tag = 'smem constant byte address 0x4 - core index']
  #allocation1 [shape = 'u32[144,128]{1,0:T(1,128)}', space=vmem, size = 0x12000, scoped, tag = 'internal scratch']
  #allocation2 [shape = 'f32[8,128]{1,0:T(8,128)}', space=vmem, size = 0x1000, scoped, tag = 'scratch operand']
  %s0 = inlined_call_operand.vmem [shape: bf16[8,256], index: 0, kind: input, shape index: {}]
  %s1 = inlined_call_operand.vmem [shape: bf16[8,128], index: 1, kind: input, shape index: {}]
  %s2 = inlined_call_operand.vmem [shape: bf16[256,128], index: 2, kind: input, shape index: {}]
  %s3 = inlined_call_operand.vmem [shape: f32[1,128], index: 3, kind: input, shape index: {}]
  %s4 = inlined_call_operand.vmem [shape: bf16[128,128], index: 4, kind: input, shape index: {}]
  %s5 = inlined_call_operand.vmem [shape: f32[1,128], index: 5, kind: input, shape index: {}]
  %s6 = inlined_call_operand.vmem [shape: bf16[128,256], index: 6, kind: input, shape index: {}]
  %s7 = inlined_call_operand.vmem [shape: f32[1,256], index: 7, kind: input, shape index: {}]
  %s8 = inlined_call_operand.vmem [shape: bf16[128,128], index: 8, kind: input, shape index: {}]
  %s9 = inlined_call_operand.vmem [shape: f32[1,128], index: 9, kind: input, shape index: {}]
  %s10 = inlined_call_operand.vmem [shape: f32[8,384], index: 10, kind: output, shape index: {}]
  %s11 = sld [smem:[#allocation0]]
  $region58: #{gsm_encoder_forward.1} parent=0
    _
  %s13 = ssub.s32 1, %s11
  %s14 = scalar_select 0, %s13, %s11
  // Predicated region
  $region2: #{gsm_encoder_forward.1} parent=0 // pred_check
    _
  $region3: #{gsm_encoder_forward.1} parent=0 // pred_check_branch
    %16 = sbr.rel (0) target = $region5
  $region4: #{gsm_encoder_forward.1} parent=0 // pred_region
    _
  $region5: #{gsm_encoder_forward.1} parent=0 // pred_fallthru
    _
  // Predicated region
  $region6: #{gsm_encoder_forward.1} parent=0 // pred_check
    _
  $region7: #{gsm_encoder_forward.1} parent=0 // pred_check_branch
    %18 = sbr.rel (0) target = $region9
  $region8: #{gsm_encoder_forward.1} parent=0 // pred_region
    _
  $region9: #{gsm_encoder_forward.1} parent=0 // pred_fallthru
    _
  // Predicated region
  $region10: #{gsm_encoder_forward.1} parent=0 // pred_check
    _
  $region11: #{gsm_encoder_forward.1} parent=0 // pred_check_branch
    %20 = sbr.rel (0) target = $region13
  $region12: #{gsm_encoder_forward.1} parent=0 // pred_region
    _
  $region13: #{gsm_encoder_forward.1} parent=0 // pred_fallthru
    _
  // Predicated region
  $region14: #{gsm_encoder_forward.1} parent=0 // pred_check
    _
  $region15: #{gsm_encoder_forward.1} parent=0 // pred_check_branch
    %22 = sbr.rel (0) target = $region17
  $region16: #{gsm_encoder_forward.1} parent=0 // pred_region
    _
  $region17: #{gsm_encoder_forward.1} parent=0 // pred_fallthru
    _
  // Predicated region
  $region18: #{gsm_encoder_forward.1} parent=0 // pred_check
    _
  $region19: #{gsm_encoder_forward.1} parent=0 // pred_check_branch
    %24 = sbr.rel (0) target = $region21
  $region20: #{gsm_encoder_forward.1} parent=0 // pred_region
    _
  $region21: #{gsm_encoder_forward.1} parent=0 // pred_fallthru
    _
  // Predicated region
  $region22: #{gsm_encoder_forward.1} parent=0 // pred_check
    _
  $region23: #{gsm_encoder_forward.1} parent=0 // pred_check_branch
    %26 = sbr.rel (0) target = $region25
  $region24: #{gsm_encoder_forward.1} parent=0 // pred_region
    _
  $region25: #{gsm_encoder_forward.1} parent=0 // pred_fallthru
    _
  // Predicated region
  $region26: #{gsm_encoder_forward.1} parent=0 // pred_check
    _
  $region27: #{gsm_encoder_forward.1} parent=0 // pred_check_branch
    %28 = sbr.rel (0) target = $region29
  $region28: #{gsm_encoder_forward.1} parent=0 // pred_region
    _
  $region29: #{gsm_encoder_forward.1} parent=0 // pred_fallthru
    _
  // Predicated region
  $region30: #{gsm_encoder_forward.1} parent=0 // pred_check
    _
  $region31: #{gsm_encoder_forward.1} parent=0 // pred_check_branch
    %30 = sbr.rel (0) target = $region33
  $region32: #{gsm_encoder_forward.1} parent=0 // pred_region
    _
  $region33: #{gsm_encoder_forward.1} parent=0 // pred_fallthru
    _
  // Predicated region
  $region34: #{gsm_encoder_forward.1} parent=0 // pred_check
    _
  $region35: #{gsm_encoder_forward.1} parent=0 // pred_check_branch
    %32 = sbr.rel (0) target = $region37
  $region36: #{gsm_encoder_forward.1} parent=0 // pred_region
    _
  $region37: #{gsm_encoder_forward.1} parent=0 // pred_fallthru
    _
  // Predicated region
  $region38: #{gsm_encoder_forward.1} parent=0 // pred_check
    _
  $region39: #{gsm_encoder_forward.1} parent=0 // pred_check_branch
    %34 = sbr.rel (0) target = $region41
  $region40: #{gsm_encoder_forward.1} parent=0 // pred_region
    _
  $region41: #{gsm_encoder_forward.1} parent=0 // pred_fallthru
    _
  %p36 = scmp.eq.s32.totalorder 0, 0
  // Predicated region
  $region42: #{gsm_encoder_forward.1} parent=0 // pred_check
    %p37 = pneg %p36
  $region43: #{gsm_encoder_forward.1} parent=0 // pred_check_branch
    %39 = sbr.rel (%p37) target = $region45
  $region44: #{gsm_encoder_forward.1} parent=0 // pred_region
    %40 = vst [vmem:[#allocation2] sm:$0xff] 0.0
  $region45: #{gsm_encoder_forward.1} parent=0 // pred_fallthru
    _
  %v41 = vld [vmem:[#allocation2] sm:$0xff]
  %v42 = vld [vmem:[%s0] sm:$0xff]
  %v43 = vld [vmem:[%s2] sm:$0xf]
  %v44 = vld [vmem:[%s2 + $0x4] sm:$0xf]
  %v45 = vld [vmem:[%s2 + $0x8] sm:$0xf]
  %v46 = vld [vmem:[%s2 + $0xc] sm:$0xf]
  %v47 = vld [vmem:[%s2 + $0x10] sm:$0xf]
  %v48 = vld [vmem:[%s2 + $0x14] sm:$0xf]
  %v49 = vld [vmem:[%s2 + $0x18] sm:$0xf]
  %v50 = vld [vmem:[%s2 + $0x1c] sm:$0xf]
  %v51 = vld [vmem:[%s2 + $0x20] sm:$0xf]
  %v52 = vld [vmem:[%s2 + $0x24] sm:$0xf]
  %v53 = vld [vmem:[%s2 + $0x28] sm:$0xf]
  %v54 = vld [vmem:[%s2 + $0x2c] sm:$0xf]
  %v55 = vld [vmem:[%s2 + $0x30] sm:$0xf]
  %v56 = vld [vmem:[%s2 + $0x34] sm:$0xf]
  %v57 = vld [vmem:[%s2 + $0x38] sm:$0xf]
  %v58 = vld [vmem:[%s2 + $0x3c] sm:$0xf]
  %v59 = vld [vmem:[%s2 + $0x40] sm:$0xf]
  %v60 = vld [vmem:[%s2 + $0x44] sm:$0xf]
  %v61 = vld [vmem:[%s2 + $0x48] sm:$0xf]
  %v62 = vld [vmem:[%s2 + $0x4c] sm:$0xf]
  %v63 = vld [vmem:[%s2 + $0x50] sm:$0xf]
  %v64 = vld [vmem:[%s2 + $0x54] sm:$0xf]
  %v65 = vld [vmem:[%s2 + $0x58] sm:$0xf]
  %v66 = vld [vmem:[%s2 + $0x5c] sm:$0xf]
  %v67 = vld [vmem:[%s2 + $0x60] sm:$0xf]
  %v68 = vld [vmem:[%s2 + $0x64] sm:$0xf]
  %v69 = vld [vmem:[%s2 + $0x68] sm:$0xf]
  %v70 = vld [vmem:[%s2 + $0x6c] sm:$0xf]
  %v71 = vld [vmem:[%s2 + $0x70] sm:$0xf]
  %v72 = vld [vmem:[%s2 + $0x74] sm:$0xf]
  %v73 = vld [vmem:[%s2 + $0x78] sm:$0xf]
  %v74 = vld [vmem:[%s2 + $0x7c] sm:$0xf]
  %v76 = vunpack.c.l.b16 %v42
  %v77 = vunpack.c.h.b16 %v42
  %v78 = vpack.c.b16 %v76, %v76
  %v79 = vpack.c.b16 %v77, %v77
  %v114 = vunpack.c.l.b16 %v43
  %v115 = vunpack.c.l.b16 %v44
  %v116 = vunpack.c.l.b16 %v45
  %v117 = vunpack.c.l.b16 %v46
  %v118 = vunpack.c.l.b16 %v47
  %v119 = vunpack.c.l.b16 %v48
  %v120 = vunpack.c.l.b16 %v49
  %v121 = vunpack.c.l.b16 %v50
  %v122 = vunpack.c.l.b16 %v51
  %v123 = vunpack.c.l.b16 %v52
  %v124 = vunpack.c.l.b16 %v53
  %v125 = vunpack.c.l.b16 %v54
  %v126 = vunpack.c.l.b16 %v55
  %v127 = vunpack.c.l.b16 %v56
  %v128 = vunpack.c.l.b16 %v57
  %v129 = vunpack.c.l.b16 %v58
  %v130 = vunpack.c.l.b16 %v59
  %v131 = vunpack.c.l.b16 %v60
  %v132 = vunpack.c.l.b16 %v61
  %v133 = vunpack.c.l.b16 %v62
  %v134 = vunpack.c.l.b16 %v63
  %v135 = vunpack.c.l.b16 %v64
  %v136 = vunpack.c.l.b16 %v65
  %v137 = vunpack.c.l.b16 %v66
  %v138 = vunpack.c.l.b16 %v67
  %v139 = vunpack.c.l.b16 %v68
  %v140 = vunpack.c.l.b16 %v69
  %v141 = vunpack.c.l.b16 %v70
  %v142 = vunpack.c.l.b16 %v71
  %v143 = vunpack.c.l.b16 %v72
  %v144 = vunpack.c.l.b16 %v73
  %v145 = vunpack.c.l.b16 %v74
  %v146 = vpack.c.b16 %v115, %v114
  %v147 = vpack.c.b16 %v117, %v116
  %v148 = vpack.c.b16 %v119, %v118
  %v149 = vpack.c.b16 %v121, %v120
  %v150 = vpack.c.b16 %v123, %v122
  %v151 = vpack.c.b16 %v125, %v124
  %v152 = vpack.c.b16 %v127, %v126
  %v153 = vpack.c.b16 %v129, %v128
  %v154 = vpack.c.b16 %v131, %v130
  %v155 = vpack.c.b16 %v133, %v132
  %v156 = vpack.c.b16 %v135, %v134
  %v157 = vpack.c.b16 %v137, %v136
  %v158 = vpack.c.b16 %v139, %v138
  %v159 = vpack.c.b16 %v141, %v140
  %v160 = vpack.c.b16 %v143, %v142
  %v161 = vpack.c.b16 %v145, %v144
  %178 = vmatprep.subr.bf16.mxu0 0
  %179 = vmatpush1.bf16.msra.mxu0 %v146
  %180 = vmatprep.subr.bf16.mxu0 0
  %181 = vmatpush1.bf16.msra.mxu0 %v147
  %182 = vmatprep.subr.bf16.mxu0 0
  %183 = vmatpush1.bf16.msra.mxu0 %v148
  %184 = vmatprep.subr.bf16.mxu0 0
  %185 = vmatpush1.bf16.msra.mxu0 %v149
  %186 = vmatprep.subr.bf16.mxu0 0
  %187 = vmatpush1.bf16.msra.mxu0 %v150
  %188 = vmatprep.subr.bf16.mxu0 0
  %189 = vmatpush1.bf16.msra.mxu0 %v151
  %190 = vmatprep.subr.bf16.mxu0 0
  %191 = vmatpush1.bf16.msra.mxu0 %v152
  %192 = vmatprep.subr.bf16.mxu0 0
  %193 = vmatpush1.bf16.msra.mxu0 %v153
  %194 = vmatprep.subr.bf16.mxu0 0
  %195 = vmatpush1.bf16.msra.mxu0 %v154
  %196 = vmatprep.subr.bf16.mxu0 0
  %197 = vmatpush1.bf16.msra.mxu0 %v155
  %198 = vmatprep.subr.bf16.mxu0 0
  %199 = vmatpush1.bf16.msra.mxu0 %v156
  %200 = vmatprep.subr.bf16.mxu0 0
  %201 = vmatpush1.bf16.msra.mxu0 %v157
  %202 = vmatprep.subr.bf16.mxu0 0
  %203 = vmatpush1.bf16.msra.mxu0 %v158
  %204 = vmatprep.subr.bf16.mxu0 0
  %205 = vmatpush1.bf16.msra.mxu0 %v159
  %206 = vmatprep.subr.bf16.mxu0 0
  %207 = vmatpush1.bf16.msra.mxu0 %v160
  %208 = vmatprep.subr.bf16.mxu0 0
  %209 = vmatpush1.bf16.msra.mxu0 %v161
  %210 = vmatprep.mubr.bf16.mxu0 %v79
  %211 = vmatmul.mubr.bf16.gmra.mrb[0].mxu0 %v78
  %v212 = vpop.f32.mrb[0].mxu0
  %v213 = vadd.f32 0.0, %v212
  %v214 = vpop.f32.mrb[0].mxu0
  %v215 = vpop.f32.mrb[0].mxu0
  %v216 = vpop.f32.mrb[0].mxu0
  %217 = vdwg.mxu0
  %v218 = vadd.f32 %v41, %v213
  %219 = vst [vmem:[#allocation2] sm:$0xff] %v218
  // Predicated region
  $region46: #{gsm_encoder_forward.1} parent=0 // pred_check
    %p220 = pneg %p36
  $region47: #{gsm_encoder_forward.1} parent=0 // pred_check_branch
    %222 = sbr.rel (%p220) target = $region49
  $region48: #{gsm_encoder_forward.1} parent=0 // pred_region
    %v223 = vld [vmem:[#allocation2] sm:$0xff]
    %v224 = vld [vmem:[%s3] sm:$0x1]
    %v226 = vlaneseq
    %v227 = vshrl.u32 %v226, 7
    %v228 = vsub.s32 0, %v227
    %v229 = vrot.slane %v224, %v228
    %v231 = vadd.f32 %v223, %v229
    %v232 = vmax.f32 %v231, 0.0
    %v233 = vpack.c.bf16 %v232, %v232
    %v234 = vld [vmem:[%s4] sm:$0xf]
    %v235 = vld [vmem:[%s4 + $0x4] sm:$0xf]
    %v236 = vld [vmem:[%s4 + $0x8] sm:$0xf]
    %v237 = vld [vmem:[%s4 + $0xc] sm:$0xf]
    %v238 = vld [vmem:[%s4 + $0x10] sm:$0xf]
    %v239 = vld [vmem:[%s4 + $0x14] sm:$0xf]
    %v240 = vld [vmem:[%s4 + $0x18] sm:$0xf]
    %v241 = vld [vmem:[%s4 + $0x1c] sm:$0xf]
    %v242 = vld [vmem:[%s4 + $0x20] sm:$0xf]
    %v243 = vld [vmem:[%s4 + $0x24] sm:$0xf]
    %v244 = vld [vmem:[%s4 + $0x28] sm:$0xf]
    %v245 = vld [vmem:[%s4 + $0x2c] sm:$0xf]
    %v246 = vld [vmem:[%s4 + $0x30] sm:$0xf]
    %v247 = vld [vmem:[%s4 + $0x34] sm:$0xf]
    %v248 = vld [vmem:[%s4 + $0x38] sm:$0xf]
    %v249 = vld [vmem:[%s4 + $0x3c] sm:$0xf]
    %v250 = vld [vmem:[%s5] sm:$0x1]
    %v252 = vlaneseq
    %v253 = vshrl.u32 %v252, 7
    %v254 = vsub.s32 0, %v253
    %v255 = vrot.slane %v250, %v254
    %v273 = vunpack.c.l.b16 %v234
    %v274 = vunpack.c.l.b16 %v235
    %v275 = vunpack.c.l.b16 %v236
    %v276 = vunpack.c.l.b16 %v237
    %v277 = vunpack.c.l.b16 %v238
    %v278 = vunpack.c.l.b16 %v239
    %v279 = vunpack.c.l.b16 %v240
    %v280 = vunpack.c.l.b16 %v241
    %v281 = vunpack.c.l.b16 %v242
    %v282 = vunpack.c.l.b16 %v243
    %v283 = vunpack.c.l.b16 %v244
    %v284 = vunpack.c.l.b16 %v245
    %v285 = vunpack.c.l.b16 %v246
    %v286 = vunpack.c.l.b16 %v247
    %v287 = vunpack.c.l.b16 %v248
    %v288 = vunpack.c.l.b16 %v249
    %v289 = vpack.c.b16 %v274, %v273
    %v290 = vpack.c.b16 %v276, %v275
    %v291 = vpack.c.b16 %v278, %v277
    %v292 = vpack.c.b16 %v280, %v279
    %v293 = vpack.c.b16 %v282, %v281
    %v294 = vpack.c.b16 %v284, %v283
    %v295 = vpack.c.b16 %v286, %v285
    %v296 = vpack.c.b16 %v288, %v287
    %305 = vmatprep.subr.bf16.mxu0 0
    %306 = vmatpush1.bf16.msra.mxu0 %v289
    %307 = vmatprep.subr.bf16.mxu0 0
    %308 = vmatpush1.bf16.msra.mxu0 %v290
    %309 = vmatprep.subr.bf16.mxu0 0
    %310 = vmatpush1.bf16.msra.mxu0 %v291
    %311 = vmatprep.subr.bf16.mxu0 0
    %312 = vmatpush1.bf16.msra.mxu0 %v292
    %313 = vmatprep.subr.bf16.mxu0 0
    %314 = vmatpush1.bf16.msra.mxu0 %v293
    %315 = vmatprep.subr.bf16.mxu0 0
    %316 = vmatpush1.bf16.msra.mxu0 %v294
    %317 = vmatprep.subr.bf16.mxu0 0
    %318 = vmatpush1.bf16.msra.mxu0 %v295
    %319 = vmatprep.subr.bf16.mxu0 0
    %320 = vmatpush1.bf16.msra.mxu0 %v296
    %321 = vmatprep.subr.bf16.mxu0 0
    %322 = vmatpush1.bf16.msra.mxu0 0
    %323 = vmatprep.subr.bf16.mxu0 0
    %324 = vmatpush1.bf16.msra.mxu0 0
    %325 = vmatprep.subr.bf16.mxu0 0
    %326 = vmatpush1.bf16.msra.mxu0 0
    %327 = vmatprep.subr.bf16.mxu0 0
    %328 = vmatpush1.bf16.msra.mxu0 0
    %329 = vmatprep.subr.bf16.mxu0 0
    %330 = vmatpush1.bf16.msra.mxu0 0
    %331 = vmatprep.subr.bf16.mxu0 0
    %332 = vmatpush1.bf16.msra.mxu0 0
    %333 = vmatprep.subr.bf16.mxu0 0
    %334 = vmatpush1.bf16.msra.mxu0 0
    %335 = vmatprep.subr.bf16.mxu0 0
    %336 = vmatpush1.bf16.msra.mxu0 0
    %337 = vmatprep.mubr.bf16.mxu0 0
    %338 = vmatmul.mubr.bf16.gmra.mrb[0].mxu0 %v233
    %v339 = vpop.f32.mrb[0].mxu0
    %v340 = vadd.f32 %v255, %v339
    %v341 = vpop.f32.mrb[0].mxu0
    %v342 = vpop.f32.mrb[0].mxu0
    %v343 = vpop.f32.mrb[0].mxu0
    %344 = vdwg.mxu0
    %v345 = vmax.f32 %v340, 0.0
    %v346 = vpack.c.bf16 %v345, %v345
    %v347 = vld [vmem:[%s6] sm:$0xff]
    %v348 = vld [vmem:[%s6 + $0x8] sm:$0xff]
    %v349 = vld [vmem:[%s6 + $0x10] sm:$0xff]
    %v350 = vld [vmem:[%s6 + $0x18] sm:$0xff]
    %v351 = vld [vmem:[%s6 + $0x20] sm:$0xff]
    %v352 = vld [vmem:[%s6 + $0x28] sm:$0xff]
    %v353 = vld [vmem:[%s6 + $0x30] sm:$0xff]
    %v354 = vld [vmem:[%s6 + $0x38] sm:$0xff]
    %v355 = vld [vmem:[%s6 + $0x40] sm:$0xff]
    %v356 = vld [vmem:[%s6 + $0x48] sm:$0xff]
    %v357 = vld [vmem:[%s6 + $0x50] sm:$0xff]
    %v358 = vld [vmem:[%s6 + $0x58] sm:$0xff]
    %v359 = vld [vmem:[%s6 + $0x60] sm:$0xff]
    %v360 = vld [vmem:[%s6 + $0x68] sm:$0xff]
    %v361 = vld [vmem:[%s6 + $0x70] sm:$0xff]
    %v362 = vld [vmem:[%s6 + $0x78] sm:$0xff]
    %v363 = vld [vmem:[%s7] sm:$0x3]
    %v365 = vlaneseq
    %v366 = vshrl.u32 %v365, 7
    %v367 = vsub.s32 0, %v366
    %v368 = vrot.slane %v363, %v367
    %v369 = vlaneseq
    %v370 = vshrl.u32 %v369, 7
    %v371 = vsub.s32 1, %v370
    %v372 = vrot.slane %v363, %v371
    %v391 = vunpack.c.l.b16 %v347
    %v392 = vunpack.c.h.b16 %v347
    %v393 = vunpack.c.l.b16 %v348
    %v394 = vunpack.c.h.b16 %v348
    %v395 = vunpack.c.l.b16 %v349
    %v396 = vunpack.c.h.b16 %v349
    %v397 = vunpack.c.l.b16 %v350
    %v398 = vunpack.c.h.b16 %v350
    %v399 = vunpack.c.l.b16 %v351
    %v400 = vunpack.c.h.b16 %v351
    %v401 = vunpack.c.l.b16 %v352
    %v402 = vunpack.c.h.b16 %v352
    %v403 = vunpack.c.l.b16 %v353
    %v404 = vunpack.c.h.b16 %v353
    %v405 = vunpack.c.l.b16 %v354
    %v406 = vunpack.c.h.b16 %v354
    %v407 = vunpack.c.l.b16 %v355
    %v408 = vunpack.c.h.b16 %v355
    %v409 = vunpack.c.l.b16 %v356
    %v410 = vunpack.c.h.b16 %v356
    %v411 = vunpack.c.l.b16 %v357
    %v412 = vunpack.c.h.b16 %v357
    %v413 = vunpack.c.l.b16 %v358
    %v414 = vunpack.c.h.b16 %v358
    %v415 = vunpack.c.l.b16 %v359
    %v416 = vunpack.c.h.b16 %v359
    %v417 = vunpack.c.l.b16 %v360
    %v418 = vunpack.c.h.b16 %v360
    %v419 = vunpack.c.l.b16 %v361
    %v420 = vunpack.c.h.b16 %v361
    %v421 = vunpack.c.l.b16 %v362
    %v422 = vunpack.c.h.b16 %v362
    %v423 = vpack.c.b16 %v393, %v391
    %v424 = vpack.c.b16 %v394, %v392
    %v425 = vpack.c.b16 %v397, %v395
    %v426 = vpack.c.b16 %v398, %v396
    %v427 = vpack.c.b16 %v401, %v399
    %v428 = vpack.c.b16 %v402, %v400
    %v429 = vpack.c.b16 %v405, %v403
    %v430 = vpack.c.b16 %v406, %v404
    %v431 = vpack.c.b16 %v409, %v407
    %v432 = vpack.c.b16 %v410, %v408
    %v433 = vpack.c.b16 %v413, %v411
    %v434 = vpack.c.b16 %v414, %v412
    %v435 = vpack.c.b16 %v417, %v415
    %v436 = vpack.c.b16 %v418, %v416
    %v437 = vpack.c.b16 %v421, %v419
    %v438 = vpack.c.b16 %v422, %v420
    %455 = vmatprep.subr.bf16.mxu0 %v424
    %456 = vmatpush1.bf16.msra.mxu0 %v423
    %457 = vmatprep.subr.bf16.mxu0 %v426
    %458 = vmatpush1.bf16.msra.mxu0 %v425
    %459 = vmatprep.subr.bf16.mxu0 %v428
    %460 = vmatpush1.bf16.msra.mxu0 %v427
    %461 = vmatprep.subr.bf16.mxu0 %v430
    %462 = vmatpush1.bf16.msra.mxu0 %v429
    %463 = vmatprep.subr.bf16.mxu0 %v432
    %464 = vmatpush1.bf16.msra.mxu0 %v431
    %465 = vmatprep.subr.bf16.mxu0 %v434
    %466 = vmatpush1.bf16.msra.mxu0 %v433
    %467 = vmatprep.subr.bf16.mxu0 %v436
    %468 = vmatpush1.bf16.msra.mxu0 %v435
    %469 = vmatprep.subr.bf16.mxu0 %v438
    %470 = vmatpush1.bf16.msra.mxu0 %v437
    %471 = vmatprep.subr.bf16.mxu0 0
    %472 = vmatpush1.bf16.msra.mxu0 0
    %473 = vmatprep.subr.bf16.mxu0 0
    %474 = vmatpush1.bf16.msra.mxu0 0
    %475 = vmatprep.subr.bf16.mxu0 0
    %476 = vmatpush1.bf16.msra.mxu0 0
    %477 = vmatprep.subr.bf16.mxu0 0
    %478 = vmatpush1.bf16.msra.mxu0 0
    %479 = vmatprep.subr.bf16.mxu0 0
    %480 = vmatpush1.bf16.msra.mxu0 0
    %481 = vmatprep.subr.bf16.mxu0 0
    %482 = vmatpush1.bf16.msra.mxu0 0
    %483 = vmatprep.subr.bf16.mxu0 0
    %484 = vmatpush1.bf16.msra.mxu0 0
    %485 = vmatprep.subr.bf16.mxu0 0
    %486 = vmatpush1.bf16.msra.mxu0 0
    %487 = vmatprep.mubr.bf16.mxu0 0
    %488 = vmatmul.mubr.bf16.gmra.mrb[0].mxu0 %v346
    %v489 = vpop.f32.mrb[0].mxu0
    %v490 = vadd.f32 %v368, %v489
    %v491 = vpop.f32.mrb[0].mxu0
    %v492 = vadd.f32 %v372, %v491
    %v493 = vpop.f32.mrb[0].mxu0
    %v494 = vpop.f32.mrb[0].mxu0
    %495 = vdwg.mxu0
    %v496 = vmul.f32 %v492, 1.442695
    %v497 = vpow.pop %v496
    %v498 = vld [vmem:[%s1] sm:$0xf]
    %v499 = vunpack.c.l.bf16 %v498
    %v500 = vmul.f32 %v499, %v497
    %v501 = vadd.f32 %v490, %v500
    %v502 = vpack.c.bf16 %v501, %v501
    %v503 = vld [vmem:[%s8] sm:$0xf]
    %v504 = vld [vmem:[%s8 + $0x4] sm:$0xf]
    %v505 = vld [vmem:[%s8 + $0x8] sm:$0xf]
    %v506 = vld [vmem:[%s8 + $0xc] sm:$0xf]
    %v507 = vld [vmem:[%s8 + $0x10] sm:$0xf]
    %v508 = vld [vmem:[%s8 + $0x14] sm:$0xf]
    %v509 = vld [vmem:[%s8 + $0x18] sm:$0xf]
    %v510 = vld [vmem:[%s8 + $0x1c] sm:$0xf]
    %v511 = vld [vmem:[%s8 + $0x20] sm:$0xf]
    %v512 = vld [vmem:[%s8 + $0x24] sm:$0xf]
    %v513 = vld [vmem:[%s8 + $0x28] sm:$0xf]
    %v514 = vld [vmem:[%s8 + $0x2c] sm:$0xf]
    %v515 = vld [vmem:[%s8 + $0x30] sm:$0xf]
    %v516 = vld [vmem:[%s8 + $0x34] sm:$0xf]
    %v517 = vld [vmem:[%s8 + $0x38] sm:$0xf]
    %v518 = vld [vmem:[%s8 + $0x3c] sm:$0xf]
    %v519 = vld [vmem:[%s9] sm:$0x1]
    %v521 = vlaneseq
    %v522 = vshrl.u32 %v521, 7
    %v523 = vsub.s32 0, %v522
    %v524 = vrot.slane %v519, %v523
    %v542 = vunpack.c.l.b16 %v503
    %v543 = vunpack.c.l.b16 %v504
    %v544 = vunpack.c.l.b16 %v505
    %v545 = vunpack.c.l.b16 %v506
    %v546 = vunpack.c.l.b16 %v507
    %v547 = vunpack.c.l.b16 %v508
    %v548 = vunpack.c.l.b16 %v509
    %v549 = vunpack.c.l.b16 %v510
    %v550 = vunpack.c.l.b16 %v511
    %v551 = vunpack.c.l.b16 %v512
    %v552 = vunpack.c.l.b16 %v513
    %v553 = vunpack.c.l.b16 %v514
    %v554 = vunpack.c.l.b16 %v515
    %v555 = vunpack.c.l.b16 %v516
    %v556 = vunpack.c.l.b16 %v517
    %v557 = vunpack.c.l.b16 %v518
    %v558 = vpack.c.b16 %v543, %v542
    %v559 = vpack.c.b16 %v545, %v544
    %v560 = vpack.c.b16 %v547, %v546
    %v561 = vpack.c.b16 %v549, %v548
    %v562 = vpack.c.b16 %v551, %v550
    %v563 = vpack.c.b16 %v553, %v552
    %v564 = vpack.c.b16 %v555, %v554
    %v565 = vpack.c.b16 %v557, %v556
    %574 = vmatprep.subr.bf16.mxu0 0
    %575 = vmatpush1.bf16.msra.mxu0 %v558
    %576 = vmatprep.subr.bf16.mxu0 0
    %577 = vmatpush1.bf16.msra.mxu0 %v559
    %578 = vmatprep.subr.bf16.mxu0 0
    %579 = vmatpush1.bf16.msra.mxu0 %v560
    %580 = vmatprep.subr.bf16.mxu0 0
    %581 = vmatpush1.bf16.msra.mxu0 %v561
    %582 = vmatprep.subr.bf16.mxu0 0
    %583 = vmatpush1.bf16.msra.mxu0 %v562
    %584 = vmatprep.subr.bf16.mxu0 0
    %585 = vmatpush1.bf16.msra.mxu0 %v563
    %586 = vmatprep.subr.bf16.mxu0 0
    %587 = vmatpush1.bf16.msra.mxu0 %v564
    %588 = vmatprep.subr.bf16.mxu0 0
    %589 = vmatpush1.bf16.msra.mxu0 %v565
    %590 = vmatprep.subr.bf16.mxu0 0
    %591 = vmatpush1.bf16.msra.mxu0 0
    %592 = vmatprep.subr.bf16.mxu0 0
    %593 = vmatpush1.bf16.msra.mxu0 0
    %594 = vmatprep.subr.bf16.mxu0 0
    %595 = vmatpush1.bf16.msra.mxu0 0
    %596 = vmatprep.subr.bf16.mxu0 0
    %597 = vmatpush1.bf16.msra.mxu0 0
    %598 = vmatprep.subr.bf16.mxu0 0
    %599 = vmatpush1.bf16.msra.mxu0 0
    %600 = vmatprep.subr.bf16.mxu0 0
    %601 = vmatpush1.bf16.msra.mxu0 0
    %602 = vmatprep.subr.bf16.mxu0 0
    %603 = vmatpush1.bf16.msra.mxu0 0
    %604 = vmatprep.subr.bf16.mxu0 0
    %605 = vmatpush1.bf16.msra.mxu0 0
    %606 = vmatprep.mubr.bf16.mxu0 0
    %607 = vmatmul.mubr.bf16.gmra.mrb[0].mxu0 %v502
    %v608 = vpop.f32.mrb[0].mxu0
    %v609 = vadd.f32 %v524, %v608
    %v610 = vpop.f32.mrb[0].mxu0
    %v611 = vpop.f32.mrb[0].mxu0
    %v612 = vpop.f32.mrb[0].mxu0
    %613 = vdwg.mxu0
    %614 = vmax.xlane.f32.xlu0 %v609
    %v615 = vpop.xlane.xlu0 %614
    %v616 = vsub.f32 %v609, %v615
    %v617 = vmul.f32 %v616, 1.442695
    %v618 = vpow.pop %v617
    %619 = vadd.xlane.f32.xlu0 %v618
    %v620 = vpop.xlane.xlu0 %619
    %v621 = vrcp.pop %v620
    %v622 = vmul.f32 %v618, %v621
    %623 = vst [vmem:[%s10] sm:$0xff] %v490
    %624 = vst [vmem:[%s10 + $0x8] sm:$0xff] %v497
    %625 = vst [vmem:[%s10 + $0x10] sm:$0xff] %v622
  $region49: #{gsm_encoder_forward.1} parent=0 // pred_fallthru
    _
  // Predicated region
  $region50: #{gsm_encoder_forward.1} parent=0 // pred_check
    _
  $region51: #{gsm_encoder_forward.1} parent=0 // pred_check_branch
    %627 = sbr.rel (0) target = $region53
  $region52: #{gsm_encoder_forward.1} parent=0 // pred_region
    _
  $region53: #{gsm_encoder_forward.1} parent=0 // pred_fallthru
    _
  // Predicated region
  $region54: #{gsm_encoder_forward.1} parent=0 // pred_check
    _
  $region55: #{gsm_encoder_forward.1} parent=0 // pred_check_branch
    %629 = sbr.rel (0) target = $region57
  $region56: #{gsm_encoder_forward.1} parent=0 // pred_region
    _
  $region57: #{gsm_encoder_forward.1} parent=0 // pred_fallthru
    _

</llo_original>
